<compile_context>
chip_gen: v7x
topology: tpu7x:2x2x1
jax: 0.10.0
libtpu: 0.0.40
codegen_flags: <defaults>
</compile_context>

<pallas_src>
import jax
import jax.numpy as jnp
from jax.experimental import pallas as pl
from jax.experimental.pallas import tpu as pltpu


def _linear_kernel(x_ref, wsel_ref, b_ref, o_ref):
    # x_ref:    (tile_rows, K*128) VMEM, lane-dense flat view of batch-major x.
    # wsel_ref: (K*128, 128) VMEM constant (index_map is constant -> copied
    #           once and kept resident by the pipeline, not re-DMAed per step).
    # b_ref:    (1,) f32 in SMEM (scalar bias).
    # o_ref:    (tile_rows, 128) VMEM, dense lane-major output (128 batch/row).
    o_ref[...] = (
        jnp.dot(x_ref[...], wsel_ref[...], preferred_element_type=jnp.float32)
        + b_ref[0]
    )


def linear_forward(x, w, b, *, max_tile_batch=262144):
    """x: (B, K) f32 (batch-major, PyTorch layout), w: (1, K), b: (1,) -> (B, 1)."""
    B, K = x.shape
    assert w.shape == (1, K) and b.shape == (1,)

    LANES = 128
    ROW = K * LANES                      # one lane-row = 128 batch rows of x
    R = pl.cdiv(B, LANES)                # logical rows of the flat view

    # Tile sizing: as many rows as the VMEM budget allows (dense (8,128)
    # blocks -> ~2560 B per row double-buffered + 2*256 KiB for W_sel), then
    # split R evenly across tiles to avoid DMAing large zero tails.
    max_rows = max(8, (max_tile_batch // LANES) // 8 * 8)
    n_tiles = pl.cdiv(R, max_rows)
    tile_rows = pl.cdiv(pl.cdiv(R, n_tiles), 8) * 8
    r_pad = n_tiles * tile_rows
    b_pad = r_pad * LANES

    # Free re-view of x (no transpose, no extra HBM pass).  The pad only
    # materializes a copy when B is not a multiple of the tile granularity.
    xf = x.astype(jnp.float32).reshape(-1)
    if b_pad != B:
        xf = jnp.pad(xf, (0, (b_pad - B) * K))
    x2 = xf.reshape(r_pad, ROW)

    # Constant selection/weight matrix: W_sel[k, j] = w[k % K] if k // K == j.
    # out[r, j] = sum_f x[128*r + j, f] * w[f]  -> dense (rows, 128) output.
    wsel = jnp.kron(jnp.eye(LANES, dtype=jnp.float32),
                    w.astype(jnp.float32).reshape(K, 1))       # (K*128, 128)

    out = pl.pallas_call(
        _linear_kernel,
        out_shape=jax.ShapeDtypeStruct((r_pad, LANES), jnp.float32),
        grid=(n_tiles,),
        in_specs=[
            # Default Buffered(2) is enough once the per-step DMA is >1 us;
            # bump to pl.Buffered(3) only if a profile still shows exposed DMA.
            pl.BlockSpec((tile_rows, ROW), lambda i: (i, 0)),      # x tile
            pl.BlockSpec((ROW, LANES), lambda i: (0, 0)),          # W_sel (resident)
            pl.BlockSpec(memory_space=pltpu.MemorySpace.SMEM),     # bias scalar
        ],
        out_specs=pl.BlockSpec((tile_rows, LANES), lambda i: (i, 0)),
        compiler_params=pltpu.CompilerParams(
            dimension_semantics=("parallel",)),   # shard batch grid across TCs
    )(x2, wsel, b.astype(jnp.float32))

    # Back to PyTorch's (B, 1) convention (reshape is free; slice is tiny).
    return out.reshape(-1)[:B].reshape(B, 1)


if __name__ == "__main__":
    key = jax.random.PRNGKey(0)
    k_x, k_w, k_b = jax.random.split(key, 3)

    in_features, out_features = 4, 1

    # Deterministic init mimicking PyTorch nn.Linear default:
    # U(-1/sqrt(in_features), 1/sqrt(in_features)). Weight stored as (out, in).
    bound = 1.0 / (in_features ** 0.5)
    w = jax.random.uniform(k_w, (out_features, in_features),
                           minval=-bound, maxval=bound, dtype=jnp.float32)
    b = jax.random.uniform(k_b, (out_features,),
                           minval=-bound, maxval=bound, dtype=jnp.float32)

    fwd = jax.jit(linear_forward, static_argnames=("max_tile_batch",))

    # Case 1: tiny batch (heavy padding path, single tile).
    x1 = jax.random.normal(k_x, (8, in_features), dtype=jnp.float32)
    y1 = jax.block_until_ready(fwd(x1, w, b))
    assert y1.shape == (8, out_features)
    assert jnp.allclose(y1, x1 @ w.T + b, atol=1e-5, rtol=1e-5)

    # Case 2: multi-tile + B not a multiple of 128 (grid/index_map + padding).
    x2 = jax.random.normal(k_x, (2176, in_features), dtype=jnp.float32)
    y2 = jax.block_until_ready(fwd(x2, w, b, max_tile_batch=1024))
    assert y2.shape == (2176, out_features)
    assert jnp.allclose(y2, x2 @ w.T + b, atol=1e-5, rtol=1e-5)

    # Case 3: multi-tile, no-pad fast path (B divides evenly into tiles).
    x3 = jax.random.normal(k_x, (2048, in_features), dtype=jnp.float32)
    y3 = jax.block_until_ready(fwd(x3, w, b, max_tile_batch=1024))
    assert y3.shape == (2048, out_features)
    assert jnp.allclose(y3, x3 @ w.T + b, atol=1e-5, rtol=1e-5)

    print("KERNEL_OK")
</pallas_src>

<mosaic_0001>
module attributes {stable_mosaic.version = 11 : i64} {
  func.func @_linear_kernel(%arg0: i32, %arg1: memref<8x512xf32, #tpu.memory_space<vmem>>, %arg2: memref<512x128xf32, #tpu.memory_space<vmem>>, %arg3: memref<1xf32, #tpu.memory_space<smem>>, %arg4: memref<8x128xf32, #tpu.memory_space<vmem>>) attributes {dimension_semantics = [#tpu.dimension_semantics<parallel>], iteration_bounds = array<i64: 1>, scalar_prefetch = 0 : i64, scratch_operands = 0 : i64, tpu.core_type = #tpu.core_type<tc>, window_params = [{transform_indices = @transform_0, window_bounds = array<i64: 8, 512>}, {pipeline_mode = #tpu.pipeline_mode<synchronous>, transform_indices = @transform_1, window_bounds = array<i64: 512, 128>}, {transform_indices = @transform_2, window_bounds = array<i64: 1>}, {transform_indices = @transform_3, window_bounds = array<i64: 8, 128>}]} {
    %c0 = arith.constant 0 : index
    %c0_0 = arith.constant 0 : index
    %0 = vector.load %arg1[%c0, %c0_0] : memref<8x512xf32, #tpu.memory_space<vmem>>, vector<8x512xf32>
    %c0_1 = arith.constant 0 : index
    %c0_2 = arith.constant 0 : index
    %1 = vector.load %arg2[%c0_1, %c0_2] : memref<512x128xf32, #tpu.memory_space<vmem>>, vector<512x128xf32>
    %cst = arith.constant dense<0.000000e+00> : vector<8x128xf32>
    %2 = tpu.matmul %0, %1, %cst {dimension_numbers = #tpu.dot_dimension_numbers<[1], [0], [0], [1], [0, 0, 1, 1], [], []>} : vector<8x512xf32>, vector<512x128xf32>, vector<8x128xf32> -> vector<8x128xf32>
    %c0_3 = arith.constant 0 : index
    %3 = memref.load %arg3[%c0_3] : memref<1xf32, #tpu.memory_space<smem>>
    %4 = vector.broadcast %3 : f32 to vector<8x128xf32>
    %5 = arith.addf %2, %4 : vector<8x128xf32>
    %c0_4 = arith.constant 0 : index
    %c0_5 = arith.constant 0 : index
    %6 = vector.load %arg4[%c0_4, %c0_5] : memref<8x128xf32, #tpu.memory_space<vmem>>, vector<8x128xf32>
    tpu.vector_store %arg4[%c0_4, %c0_5], %5 {strides = array<i32>} : memref<8x128xf32, #tpu.memory_space<vmem>>, vector<8x128xf32>,
    return
  }
  func.func @transform_0(%arg0: i32) -> (i32, i32) {
    %c0_i32 = arith.constant 0 : i32
    %c0_i32_0 = arith.constant 0 : i32
    return %arg0, %c0_i32 : i32, i32
  }
  func.func @transform_1(%arg0: i32) -> (i32, i32) {
    %c0_i32 = arith.constant 0 : i32
    %c0_i32_0 = arith.constant 0 : i32
    %c0_i32_1 = arith.constant 0 : i32
    return %c0_i32, %c0_i32_0 : i32, i32
  }
  func.func @transform_2(%arg0: i32) -> i32 {
    %c0_i32 = arith.constant 0 : i32
    %c0_i32_0 = arith.constant 0 : i32
    return %c0_i32 : i32
  }
  func.func @transform_3(%arg0: i32) -> (i32, i32) {
    %c0_i32 = arith.constant 0 : i32
    %c0_i32_0 = arith.constant 0 : i32
    return %arg0, %c0_i32 : i32, i32
  }
}

</mosaic_0001>

<llo_original>
// kernel: linear_forward.1
$region0: #{linear_forward.1}
  #allocation0 [shape = 'u32[]', space=smem, size = 0x4, offset = 0x4, fixed_abs, tag = 'smem constant byte address 0x4 - core index']
  #allocation1 [shape = 'u32[144,128]{1,0:T(1,128)}', space=vmem, size = 0x12000, scoped, tag = 'internal scratch']
  #allocation2 [shape = 'f32[1]{0:T(128)S(6)}', space=smem, size = 0x200, scoped, tag = 'scoped memory for linear_forward.1']
  %s0 = inlined_call_operand.vmem [shape: f32[8,512], index: 0, kind: input, shape index: {}]
  %s1 = inlined_call_operand.vmem [shape: f32[512,128], index: 1, kind: input, shape index: {}]
  %s2 = inlined_call_operand.<no memory space> [shape: f32[1], index: 2, kind: input, shape index: {}]
  %s3 = inlined_call_operand.vmem [shape: f32[8,128], index: 3, kind: output, shape index: {}]
  %s4 = sld [smem:[#allocation0]]
  $region22: #{linear_forward.1} parent=0
    _
  %s6 = ssub.s32 1, %s4
  %s7 = scalar_select 0, %s6, %s4
  %8 = sst [smem:[#allocation2]] %s2
  // Predicated region
  $region2: #{linear_forward.1} parent=0 // pred_check
    _
  $region3: #{linear_forward.1} parent=0 // pred_check_branch
    %10 = sbr.rel (0) target = $region5
  $region4: #{linear_forward.1} parent=0 // pred_region
    _
  $region5: #{linear_forward.1} parent=0 // pred_fallthru
    _
  // Predicated region
  $region6: #{linear_forward.1} parent=0 // pred_check
    _
  $region7: #{linear_forward.1} parent=0 // pred_check_branch
    %12 = sbr.rel (0) target = $region9
  $region8: #{linear_forward.1} parent=0 // pred_region
    _
  $region9: #{linear_forward.1} parent=0 // pred_fallthru
    _
  // Predicated region
  $region10: #{linear_forward.1} parent=0 // pred_check
    _
  $region11: #{linear_forward.1} parent=0 // pred_check_branch
    %14 = sbr.rel (0) target = $region13
  $region12: #{linear_forward.1} parent=0 // pred_region
    _
  $region13: #{linear_forward.1} parent=0 // pred_fallthru
    _
  %v15 = vld [vmem:[%s0] sm:$0xff]
  %v16 = vld [vmem:[%s0 + $0x8] sm:$0xff]
  %v17 = vld [vmem:[%s0 + $0x10] sm:$0xff]
  %v18 = vld [vmem:[%s0 + $0x18] sm:$0xff]
  %v19 = vld [vmem:[%s1] sm:$0xff]
  %v20 = vld [vmem:[%s1 + $0x8] sm:$0xff]
  %v21 = vld [vmem:[%s1 + $0x10] sm:$0xff]
  %v22 = vld [vmem:[%s1 + $0x18] sm:$0xff]
  %v23 = vld [vmem:[%s1 + $0x20] sm:$0xff]
  %v24 = vld [vmem:[%s1 + $0x28] sm:$0xff]
  %v25 = vld [vmem:[%s1 + $0x30] sm:$0xff]
  %v26 = vld [vmem:[%s1 + $0x38] sm:$0xff]
  %v27 = vld [vmem:[%s1 + $0x40] sm:$0xff]
  %v28 = vld [vmem:[%s1 + $0x48] sm:$0xff]
  %v29 = vld [vmem:[%s1 + $0x50] sm:$0xff]
  %v30 = vld [vmem:[%s1 + $0x58] sm:$0xff]
  %v31 = vld [vmem:[%s1 + $0x60] sm:$0xff]
  %v32 = vld [vmem:[%s1 + $0x68] sm:$0xff]
  %v33 = vld [vmem:[%s1 + $0x70] sm:$0xff]
  %v34 = vld [vmem:[%s1 + $0x78] sm:$0xff]
  %v35 = vld [vmem:[%s1 + $0x80] sm:$0xff]
  %v36 = vld [vmem:[%s1 + $0x88] sm:$0xff]
  %v37 = vld [vmem:[%s1 + $0x90] sm:$0xff]
  %v38 = vld [vmem:[%s1 + $0x98] sm:$0xff]
  %v39 = vld [vmem:[%s1 + $0xa0] sm:$0xff]
  %v40 = vld [vmem:[%s1 + $0xa8] sm:$0xff]
  %v41 = vld [vmem:[%s1 + $0xb0] sm:$0xff]
  %v42 = vld [vmem:[%s1 + $0xb8] sm:$0xff]
  %v43 = vld [vmem:[%s1 + $0xc0] sm:$0xff]
  %v44 = vld [vmem:[%s1 + $0xc8] sm:$0xff]
  %v45 = vld [vmem:[%s1 + $0xd0] sm:$0xff]
  %v46 = vld [vmem:[%s1 + $0xd8] sm:$0xff]
  %v47 = vld [vmem:[%s1 + $0xe0] sm:$0xff]
  %v48 = vld [vmem:[%s1 + $0xe8] sm:$0xff]
  %v49 = vld [vmem:[%s1 + $0xf0] sm:$0xff]
  %v50 = vld [vmem:[%s1 + $0xf8] sm:$0xff]
  %v51 = vld [vmem:[%s1 + $0x100] sm:$0xff]
  %v52 = vld [vmem:[%s1 + $0x108] sm:$0xff]
  %v53 = vld [vmem:[%s1 + $0x110] sm:$0xff]
  %v54 = vld [vmem:[%s1 + $0x118] sm:$0xff]
  %v55 = vld [vmem:[%s1 + $0x120] sm:$0xff]
  %v56 = vld [vmem:[%s1 + $0x128] sm:$0xff]
  %v57 = vld [vmem:[%s1 + $0x130] sm:$0xff]
  %v58 = vld [vmem:[%s1 + $0x138] sm:$0xff]
  %v59 = vld [vmem:[%s1 + $0x140] sm:$0xff]
  %v60 = vld [vmem:[%s1 + $0x148] sm:$0xff]
  %v61 = vld [vmem:[%s1 + $0x150] sm:$0xff]
  %v62 = vld [vmem:[%s1 + $0x158] sm:$0xff]
  %v63 = vld [vmem:[%s1 + $0x160] sm:$0xff]
  %v64 = vld [vmem:[%s1 + $0x168] sm:$0xff]
  %v65 = vld [vmem:[%s1 + $0x170] sm:$0xff]
  %v66 = vld [vmem:[%s1 + $0x178] sm:$0xff]
  %v67 = vld [vmem:[%s1 + $0x180] sm:$0xff]
  %v68 = vld [vmem:[%s1 + $0x188] sm:$0xff]
  %v69 = vld [vmem:[%s1 + $0x190] sm:$0xff]
  %v70 = vld [vmem:[%s1 + $0x198] sm:$0xff]
  %v71 = vld [vmem:[%s1 + $0x1a0] sm:$0xff]
  %v72 = vld [vmem:[%s1 + $0x1a8] sm:$0xff]
  %v73 = vld [vmem:[%s1 + $0x1b0] sm:$0xff]
  %v74 = vld [vmem:[%s1 + $0x1b8] sm:$0xff]
  %v75 = vld [vmem:[%s1 + $0x1c0] sm:$0xff]
  %v76 = vld [vmem:[%s1 + $0x1c8] sm:$0xff]
  %v77 = vld [vmem:[%s1 + $0x1d0] sm:$0xff]
  %v78 = vld [vmem:[%s1 + $0x1d8] sm:$0xff]
  %v79 = vld [vmem:[%s1 + $0x1e0] sm:$0xff]
  %v80 = vld [vmem:[%s1 + $0x1e8] sm:$0xff]
  %v81 = vld [vmem:[%s1 + $0x1f0] sm:$0xff]
  %v82 = vld [vmem:[%s1 + $0x1f8] sm:$0xff]
  %s83 = sld [smem:[#allocation2]]
  %v84 = vstv %s83
  %85 = vmatprep.subr.mxu0 0.0
  %86 = vmatpush1.msra.mxu0 %v19
  %87 = vmatprep.subr.mxu0 0.0
  %88 = vmatpush1.msra.mxu0 %v20
  %89 = vmatprep.subr.mxu0 0.0
  %90 = vmatpush1.msra.mxu0 %v21
  %91 = vmatprep.subr.mxu0 0.0
  %92 = vmatpush1.msra.mxu0 %v22
  %93 = vmatprep.subr.mxu0 0.0
  %94 = vmatpush1.msra.mxu0 %v23
  %95 = vmatprep.subr.mxu0 0.0
  %96 = vmatpush1.msra.mxu0 %v24
  %97 = vmatprep.subr.mxu0 0.0
  %98 = vmatpush1.msra.mxu0 %v25
  %99 = vmatprep.subr.mxu0 0.0
  %100 = vmatpush1.msra.mxu0 %v26
  %101 = vmatprep.subr.mxu0 0.0
  %102 = vmatpush1.msra.mxu0 %v27
  %103 = vmatprep.subr.mxu0 0.0
  %104 = vmatpush1.msra.mxu0 %v28
  %105 = vmatprep.subr.mxu0 0.0
  %106 = vmatpush1.msra.mxu0 %v29
  %107 = vmatprep.subr.mxu0 0.0
  %108 = vmatpush1.msra.mxu0 %v30
  %109 = vmatprep.subr.mxu0 0.0
  %110 = vmatpush1.msra.mxu0 %v31
  %111 = vmatprep.subr.mxu0 0.0
  %112 = vmatpush1.msra.mxu0 %v32
  %113 = vmatprep.subr.mxu0 0.0
  %114 = vmatpush1.msra.mxu0 %v33
  %115 = vmatprep.subr.mxu0 0.0
  %116 = vmatpush1.msra.mxu0 %v34
  %117 = vmatprep.subr.mxu0 0.0
  %118 = vmatpush1.msra.mxu0 %v35
  %119 = vmatprep.subr.mxu0 0.0
  %120 = vmatpush1.msra.mxu0 %v36
  %121 = vmatprep.subr.mxu0 0.0
  %122 = vmatpush1.msra.mxu0 %v37
  %123 = vmatprep.subr.mxu0 0.0
  %124 = vmatpush1.msra.mxu0 %v38
  %125 = vmatprep.subr.mxu0 0.0
  %126 = vmatpush1.msra.mxu0 %v39
  %127 = vmatprep.subr.mxu0 0.0
  %128 = vmatpush1.msra.mxu0 %v40
  %129 = vmatprep.subr.mxu0 0.0
  %130 = vmatpush1.msra.mxu0 %v41
  %131 = vmatprep.subr.mxu0 0.0
  %132 = vmatpush1.msra.mxu0 %v42
  %133 = vmatprep.subr.mxu0 0.0
  %134 = vmatpush1.msra.mxu0 %v43
  %135 = vmatprep.subr.mxu0 0.0
  %136 = vmatpush1.msra.mxu0 %v44
  %137 = vmatprep.subr.mxu0 0.0
  %138 = vmatpush1.msra.mxu0 %v45
  %139 = vmatprep.subr.mxu0 0.0
  %140 = vmatpush1.msra.mxu0 %v46
  %141 = vmatprep.subr.mxu0 0.0
  %142 = vmatpush1.msra.mxu0 %v47
  %143 = vmatprep.subr.mxu0 0.0
  %144 = vmatpush1.msra.mxu0 %v48
  %145 = vmatprep.subr.mxu0 0.0
  %146 = vmatpush1.msra.mxu0 %v49
  %147 = vmatprep.subr.mxu0 0.0
  %148 = vmatpush1.msra.mxu0 %v50
  %149 = vmatprep.mubr.f32.mxu0 %v16
  %150 = vmatmul.mubr.f32.gmra.mrb[0].mxu0 %v15
  %v151 = vpop.f32.mrb[0].mxu0
  %v152 = vadd.f32 %v84, %v151
  %v153 = vpop.f32.mrb[0].mxu0
  %154 = vdwg.mxu0
  %155 = vmatprep.subr.mxu0 0.0
  %156 = vmatpush1.msra.mxu0 %v51
  %157 = vmatprep.subr.mxu0 0.0
  %158 = vmatpush1.msra.mxu0 %v52
  %159 = vmatprep.subr.mxu0 0.0
  %160 = vmatpush1.msra.mxu0 %v53
  %161 = vmatprep.subr.mxu0 0.0
  %162 = vmatpush1.msra.mxu0 %v54
  %163 = vmatprep.subr.mxu0 0.0
  %164 = vmatpush1.msra.mxu0 %v55
  %165 = vmatprep.subr.mxu0 0.0
  %166 = vmatpush1.msra.mxu0 %v56
  %167 = vmatprep.subr.mxu0 0.0
  %168 = vmatpush1.msra.mxu0 %v57
  %169 = vmatprep.subr.mxu0 0.0
  %170 = vmatpush1.msra.mxu0 %v58
  %171 = vmatprep.subr.mxu0 0.0
  %172 = vmatpush1.msra.mxu0 %v59
  %173 = vmatprep.subr.mxu0 0.0
  %174 = vmatpush1.msra.mxu0 %v60
  %175 = vmatprep.subr.mxu0 0.0
  %176 = vmatpush1.msra.mxu0 %v61
  %177 = vmatprep.subr.mxu0 0.0
  %178 = vmatpush1.msra.mxu0 %v62
  %179 = vmatprep.subr.mxu0 0.0
  %180 = vmatpush1.msra.mxu0 %v63
  %181 = vmatprep.subr.mxu0 0.0
  %182 = vmatpush1.msra.mxu0 %v64
  %183 = vmatprep.subr.mxu0 0.0
  %184 = vmatpush1.msra.mxu0 %v65
  %185 = vmatprep.subr.mxu0 0.0
  %186 = vmatpush1.msra.mxu0 %v66
  %187 = vmatprep.subr.mxu0 0.0
  %188 = vmatpush1.msra.mxu0 %v67
  %189 = vmatprep.subr.mxu0 0.0
  %190 = vmatpush1.msra.mxu0 %v68
  %191 = vmatprep.subr.mxu0 0.0
  %192 = vmatpush1.msra.mxu0 %v69
  %193 = vmatprep.subr.mxu0 0.0
  %194 = vmatpush1.msra.mxu0 %v70
  %195 = vmatprep.subr.mxu0 0.0
  %196 = vmatpush1.msra.mxu0 %v71
  %197 = vmatprep.subr.mxu0 0.0
  %198 = vmatpush1.msra.mxu0 %v72
  %199 = vmatprep.subr.mxu0 0.0
  %200 = vmatpush1.msra.mxu0 %v73
  %201 = vmatprep.subr.mxu0 0.0
  %202 = vmatpush1.msra.mxu0 %v74
  %203 = vmatprep.subr.mxu0 0.0
  %204 = vmatpush1.msra.mxu0 %v75
  %205 = vmatprep.subr.mxu0 0.0
  %206 = vmatpush1.msra.mxu0 %v76
  %207 = vmatprep.subr.mxu0 0.0
  %208 = vmatpush1.msra.mxu0 %v77
  %209 = vmatprep.subr.mxu0 0.0
  %210 = vmatpush1.msra.mxu0 %v78
  %211 = vmatprep.subr.mxu0 0.0
  %212 = vmatpush1.msra.mxu0 %v79
  %213 = vmatprep.subr.mxu0 0.0
  %214 = vmatpush1.msra.mxu0 %v80
  %215 = vmatprep.subr.mxu0 0.0
  %216 = vmatpush1.msra.mxu0 %v81
  %217 = vmatprep.subr.mxu0 0.0
  %218 = vmatpush1.msra.mxu0 %v82
  %219 = vmatprep.mubr.f32.mxu0 %v18
  %220 = vmatmul.mubr.f32.gmra.mrb[0].mxu0 %v17
  %v221 = vpop.f32.mrb[0].mxu0
  %v222 = vadd.f32 %v152, %v221
  %v223 = vpop.f32.mrb[0].mxu0
  %224 = vdwg.mxu0
  %225 = vst [vmem:[%s3] sm:$0xff] %v222
  // Predicated region
  $region14: #{linear_forward.1} parent=0 // pred_check
    _
  $region15: #{linear_forward.1} parent=0 // pred_check_branch
    %227 = sbr.rel (0) target = $region17
  $region16: #{linear_forward.1} parent=0 // pred_region
    _
  $region17: #{linear_forward.1} parent=0 // pred_fallthru
    _
  // Predicated region
  $region18: #{linear_forward.1} parent=0 // pred_check
    _
  $region19: #{linear_forward.1} parent=0 // pred_check_branch
    %229 = sbr.rel (0) target = $region21
  $region20: #{linear_forward.1} parent=0 // pred_region
    _
  $region21: #{linear_forward.1} parent=0 // pred_fallthru
    _

</llo_original>
